<compile_context>
chip_gen: v5e
topology: v5e:2x2
jax: 0.10.0
libtpu: 0.0.40
codegen_flags: <defaults>
</compile_context>

<pallas_src>
import functools

import jax
import jax.numpy as jnp
from jax.experimental import pallas as pl
from jax.experimental.pallas import tpu as pltpu


# ----------------------------------------------------------------------------- budgets
def _vmem_capacity_bytes():
    """Best-effort VMEM capacity query; conservative (v7x = 64 MiB) when unknown."""
    try:
        info = pltpu.get_tpu_info()
        for attr in ("vmem_capacity_bytes", "vmem_size_bytes", "vmem_bytes"):
            v = getattr(info, attr, None)
            if v:
                return int(v)
    except Exception:
        pass
    try:
        kind = jax.devices()[0].device_kind.lower()
        if "v5" in kind or "v6" in kind:
            return 128 << 20
    except Exception:
        pass
    return 64 << 20


def _budgets():
    cap = _vmem_capacity_bytes()
    if cap >= (96 << 20):        # v5e / v6e / v5p: 128 MiB VMEM
        return {"max_block_bytes": 8 << 20, "vmem_limit": 80 << 20}
    return {"max_block_bytes": 6 << 20, "vmem_limit": 44 << 20}   # v7x: 64 MiB


def _pick_tiles(hw, c, itemsize, max_block_bytes, max_lanes=32768):
    """Return (spatial_tile, channel_tile): lane-dense blocks that divide the array,
    satisfy the (8, 128) divisibility rule (or use full extents), and fit the
    per-block byte budget."""
    # Full extent fits.
    if c * hw * itemsize <= max_block_bytes and hw <= max_lanes:
        return hw, c
    # Prefer HW tiling with all channels (keeps the per-channel reduction local).
    lane_budget = min(max_lanes, max_block_bytes // max(1, c * itemsize))
    t = (lane_budget // 128) * 128
    while t >= 128:
        if hw % t == 0:
            return t, c
        t -= 128
    # HW has no suitable 128-multiple divisor: tile channels instead (full HW lanes).
    if hw <= max_lanes:
        ch_budget = max_block_bytes // max(1, hw * itemsize)
        tc = (min(c, ch_budget) // 8) * 8
        while tc >= 8:
            if c % tc == 0:
                return hw, tc
            tc -= 8
    # TODO(synk): pathological shapes (huge prime-ish HW with C not a multiple of 8)
    # would need masked/Element tiling; fall back to a full-extent block.
    return hw, c


# ----------------------------------------------------------------------------- kernels
def _partial_sum_kernel(x_ref, psum_ref):
    """Pass 1: per-(batch, channel-tile) partial sums over the HW (reduction) axis.
    Output block is resident across the innermost ('arbitrary') axis."""
    @pl.when(pl.program_id(2) == 0)
    def _():
        psum_ref[...] = jnp.zeros_like(psum_ref)
    psum_ref[...] += jnp.sum(x_ref[...].astype(jnp.float32), axis=-1, keepdims=True)


def _scale_kernel(x_ref, gamma_ref, out_ref):
    """Pass 2: y = gamma * x (native dtype; gamma pre-cast in the wrapper)."""
    out_ref[...] = (x_ref[...] * gamma_ref[...]).astype(out_ref.dtype)


def _fused_kernel(x_ref, w1_ref, b1_ref, w2_ref, b2_ref, w3_ref, b3_ref,
                  y_ref, gamma_ref, *, inv_count, standardize, out_mul):
    """Single-pass path for VMEM-resident x: reduce + standardize + MLP + scale,
    so x is read from HBM exactly once."""
    xf = x_ref[...].astype(jnp.float32)                      # (N, C, HW)
    g = jnp.sum(xf, axis=-1, keepdims=True)                  # (N, C, 1)
    g = jnp.sum(g, axis=0) * inv_count                       # (C, 1) per-channel mean
    if standardize:
        mu = jnp.mean(g, axis=0, keepdims=True)              # (1, 1)
        var = jnp.mean((g - mu) * (g - mu), axis=0, keepdims=True)   # ddof=0
        g = (g - mu) / jnp.sqrt(var + 1e-5)
    # MLP in column-vector form (h = W @ g + b): no transposes of live data.
    h = jnp.dot(w1_ref[...], g, preferred_element_type=jnp.float32) + b1_ref[...]
    h = h * jax.nn.sigmoid(h)                                 # SiLU
    h = jnp.dot(w2_ref[...], h, preferred_element_type=jnp.float32) + b2_ref[...]
    h = h * jax.nn.sigmoid(h)                                 # SiLU
    h = jnp.dot(w3_ref[...], h, preferred_element_type=jnp.float32) + b3_ref[...]
    gamma = jax.nn.sigmoid(h) * out_mul                       # (C, 1)
    gamma_ref[...] = gamma
    y_ref[...] = (x_ref[...] * gamma[None, :, :].astype(x_ref.dtype)).astype(y_ref.dtype)


# ----------------------------------------------------------------------------- wrapper
def case_forward(x_nchw, params, *, standardize=True, out_mul=2.0, force_two_pass=False):
    """Pallas CaSE forward (training-mode branch). x_nchw: (N, C, H, W).
    Returns (y, gamma) with gamma shaped (C,)."""
    N, C, H, W = x_nchw.shape
    HW = H * W
    L = N * HW
    w1, b1, w2, b2, w3, b3 = params
    hidden = w1.shape[0]
    dtype = x_nchw.dtype
    itemsize = jnp.dtype(dtype).itemsize

    budgets = _budgets()
    vmem_limit = budgets["vmem_limit"]

    # (N, C, H, W) -> (N, C, H*W): contiguous reshape, NO copy / transpose.
    x = x_nchw.reshape(N, C, HW)
    x_bytes = N * C * HW * itemsize

    # ---- Fused single-kernel path: in + out + f32 temp comfortably fit under the
    #      scoped VMEM limit -> x is read from HBM once instead of twice.
    fused_fits = (2 * x_bytes + N * C * HW * 4 + (2 << 20)) <= vmem_limit
    if fused_fits and not force_two_pass:
        w1f = w1.astype(jnp.float32)
        w2f = w2.astype(jnp.float32)
        w3f = w3.astype(jnp.float32)
        b1c = b1.reshape(hidden, 1).astype(jnp.float32)
        b2c = b2.reshape(hidden, 1).astype(jnp.float32)
        b3c = b3.reshape(C, 1).astype(jnp.float32)
        kernel = functools.partial(_fused_kernel, inv_count=1.0 / L,
                                   standardize=standardize, out_mul=float(out_mul))
        y, gamma = pl.pallas_call(
            kernel,
            grid=(1,),
            in_specs=[
                pl.BlockSpec((N, C, HW), lambda i: (0, 0, 0)),       # x (resident)
                pl.BlockSpec((hidden, C), lambda i: (0, 0)),         # W1
                pl.BlockSpec((hidden, 1), lambda i: (0, 0)),         # b1
                pl.BlockSpec((hidden, hidden), lambda i: (0, 0)),    # W2
                pl.BlockSpec((hidden, 1), lambda i: (0, 0)),         # b2
                pl.BlockSpec((C, hidden), lambda i: (0, 0)),         # W3
                pl.BlockSpec((C, 1), lambda i: (0, 0)),              # b3
            ],
            out_specs=(
                pl.BlockSpec((N, C, HW), lambda i: (0, 0, 0)),       # y
                pl.BlockSpec((C, 1), lambda i: (0, 0)),              # gamma
            ),
            out_shape=(
                jax.ShapeDtypeStruct((N, C, HW), dtype),
                jax.ShapeDtypeStruct((C, 1), jnp.float32),
            ),
            compiler_params=pltpu.CompilerParams(
                dimension_semantics=("arbitrary",),
                vmem_limit_bytes=vmem_limit),
            cost_estimate=pl.CostEstimate(
                flops=int(2 * N * C * HW),
                transcendentals=int(2 * hidden + C),
                bytes_accessed=int(2 * x_bytes)),
        )(x, w1f, b1c, w2f, b2c, w3f, b3c)
        return y.reshape(N, C, H, W), gamma.reshape(C)

    # ---- Split path: pass 1 (partial sums, megacore-friendly) + XLA MLP + pass 2.
    tl, tc = _pick_tiles(HW, C, itemsize, budgets["max_block_bytes"])
    grid = (N, C // tc, HW // tl)

    psums = pl.pallas_call(
        _partial_sum_kernel,
        grid=grid,
        in_specs=[pl.BlockSpec((1, tc, tl), lambda n, c, t: (n, c, t))],
        out_specs=pl.BlockSpec((1, tc, 1), lambda n, c, t: (n, c, 0)),
        out_shape=jax.ShapeDtypeStruct((N, C, 1), jnp.float32),
        compiler_params=pltpu.CompilerParams(
            dimension_semantics=("parallel", "parallel", "arbitrary"),
            vmem_limit_bytes=vmem_limit),
        cost_estimate=pl.CostEstimate(
            flops=int(N * C * HW), transcendentals=0, bytes_accessed=int(x_bytes)),
    )(x)

    # Standardize + 3-layer MLP is O(C*hidden) -- microseconds; do it in plain XLA so
    # pass 1 stays a pure parallel reduction (no shared scratch, no serial epilogue).
    g = jnp.sum(psums, axis=0)[:, 0] / L                      # (C,) per-channel mean
    if standardize:
        mu = jnp.mean(g)
        var = jnp.mean((g - mu) * (g - mu))                   # ddof=0 == unbiased=False
        g = (g - mu) / jnp.sqrt(var + 1e-5)
    h = jax.nn.silu(w1.astype(jnp.float32) @ g + b1.astype(jnp.float32))
    h = jax.nn.silu(w2.astype(jnp.float32) @ h + b2.astype(jnp.float32))
    gamma = jax.nn.sigmoid(w3.astype(jnp.float32) @ h + b3.astype(jnp.float32)) * out_mul

    # Pass 2: y = gamma * x in native dtype, all grid axes parallel.
    # TODO(synk): a (C, 128) lane-broadcast gamma layout would avoid the per-step lane
    # splat of the width-1 operand, but the kernel is HBM-bound so the win is noise.
    gamma_b = gamma.reshape(1, C, 1).astype(dtype)
    y = pl.pallas_call(
        _scale_kernel,
        grid=grid,
        in_specs=[
            pl.BlockSpec((1, tc, tl), lambda n, c, t: (n, c, t)),
            pl.BlockSpec((1, tc, 1), lambda n, c, t: (0, c, 0)),
        ],
        out_specs=pl.BlockSpec((1, tc, tl), lambda n, c, t: (n, c, t)),
        out_shape=jax.ShapeDtypeStruct((N, C, HW), dtype),
        compiler_params=pltpu.CompilerParams(
            dimension_semantics=("parallel", "parallel", "parallel"),
            vmem_limit_bytes=vmem_limit),
        cost_estimate=pl.CostEstimate(
            flops=int(N * C * HW), transcendentals=0, bytes_accessed=int(2 * x_bytes)),
    )(x, gamma_b)

    return y.reshape(N, C, H, W), gamma.astype(jnp.float32).reshape(C)


# ----------------------------------------------------------------------------- reference
def case_ref(x, params, *, standardize=True, out_mul=2.0):
    """Pure-JAX reference mirroring the PyTorch training-mode forward."""
    w1, b1, w2, b2, w3, b3 = params
    g = jnp.mean(x, axis=(0, 2, 3))
    if standardize:
        g = (g - jnp.mean(g)) / jnp.sqrt(jnp.var(g) + 1e-5)   # ddof=0 == unbiased=False
    h = jax.nn.silu(g @ w1.T + b1)
    h = jax.nn.silu(h @ w2.T + b2)
    gam = jax.nn.sigmoid(h @ w3.T + b3) * out_mul
    return gam.reshape(1, -1, 1, 1) * x, gam.reshape(-1)


def init_params(key, cin, reduction=64, min_units=16):
    hidden = max(min_units, cin // reduction)
    k1, k2, k3, k4, k5, k6 = jax.random.split(key, 6)

    # PyTorch-Linear-style uniform(-1/sqrt(fan_in), 1/sqrt(fan_in)) init.
    def lin(kw, kb, fan_out, fan_in):
        bound = 1.0 / jnp.sqrt(fan_in)
        w = jax.random.uniform(kw, (fan_out, fan_in), jnp.float32, -bound, bound)
        b = jax.random.uniform(kb, (fan_out,), jnp.float32, -bound, bound)
        return w, b

    w1, b1 = lin(k1, k2, hidden, cin)
    w2, b2 = lin(k3, k4, hidden, hidden)
    # NOTE: the module's reset_parameters() zeros lin3 (making gamma == 1.0 exactly);
    # we use small non-zero weights here so the full MLP path is exercised.
    w3, b3 = lin(k5, k6, cin, hidden)
    return (w1, b1, w2, b2, w3, b3)


if __name__ == "__main__":
    key = jax.random.PRNGKey(0)
    kx, kp = jax.random.split(key)

    N, C, H, W = 2, 4, 16, 16            # cin=4 -> hidden = max(16, 4//64) = 16
    x = jax.random.normal(kx, (N, C, H, W), jnp.float32)
    params = init_params(kp, cin=C, reduction=64, min_units=16)

    out_ref, gamma_ref = case_ref(x, params, standardize=True, out_mul=2.0)

    # Fused single-kernel path (x resident in VMEM -> 2 HBM passes).
    out_f, gamma_f = case_forward(x, params, standardize=True, out_mul=2.0)
    out_f = jax.block_until_ready(out_f)
    assert out_f.shape == (N, C, H, W)
    assert jnp.allclose(out_f, out_ref, atol=1e-5, rtol=1e-5), "fused output mismatch"
    assert jnp.allclose(gamma_f, gamma_ref, atol=1e-5, rtol=1e-5), "fused gamma mismatch"

    # Split two-kernel path, forced, to exercise the large-x code path as well.
    out_s, gamma_s = case_forward(x, params, standardize=True, out_mul=2.0,
                                  force_two_pass=True)
    out_s = jax.block_until_ready(out_s)
    assert jnp.allclose(out_s, out_ref, atol=1e-5, rtol=1e-5), "split output mismatch"
    assert jnp.allclose(gamma_s, gamma_ref, atol=1e-5, rtol=1e-5), "split gamma mismatch"

    print("KERNEL_OK")
</pallas_src>

<mosaic_0001>
module attributes {stable_mosaic.version = 11 : i64} {
  func.func @_fused_kernel(%arg0: i32, %arg1: memref<2x4x256xf32, #tpu.memory_space<vmem>>, %arg2: memref<16x4xf32, #tpu.memory_space<vmem>>, %arg3: memref<16x1xf32, #tpu.memory_space<vmem>>, %arg4: memref<16x16xf32, #tpu.memory_space<vmem>>, %arg5: memref<16x1xf32, #tpu.memory_space<vmem>>, %arg6: memref<4x16xf32, #tpu.memory_space<vmem>>, %arg7: memref<4x1xf32, #tpu.memory_space<vmem>>, %arg8: memref<2x4x256xf32, #tpu.memory_space<vmem>>, %arg9: memref<4x1xf32, #tpu.memory_space<vmem>>) attributes {dimension_semantics = [#tpu.dimension_semantics<arbitrary>], iteration_bounds = array<i64: 1>, scalar_prefetch = 0 : i64, scratch_operands = 0 : i64, tpu.core_type = #tpu.core_type<tc>, window_params = [{pipeline_mode = #tpu.pipeline_mode<synchronous>, transform_indices = @transform_0, window_bounds = array<i64: 2, 4, 256>}, {pipeline_mode = #tpu.pipeline_mode<synchronous>, transform_indices = @transform_1, window_bounds = array<i64: 16, 4>}, {pipeline_mode = #tpu.pipeline_mode<synchronous>, transform_indices = @transform_2, window_bounds = array<i64: 16, 1>}, {pipeline_mode = #tpu.pipeline_mode<synchronous>, transform_indices = @transform_3, window_bounds = array<i64: 16, 16>}, {pipeline_mode = #tpu.pipeline_mode<synchronous>, transform_indices = @transform_4, window_bounds = array<i64: 16, 1>}, {pipeline_mode = #tpu.pipeline_mode<synchronous>, transform_indices = @transform_5, window_bounds = array<i64: 4, 16>}, {pipeline_mode = #tpu.pipeline_mode<synchronous>, transform_indices = @transform_6, window_bounds = array<i64: 4, 1>}, {pipeline_mode = #tpu.pipeline_mode<synchronous>, transform_indices = @transform_7, window_bounds = array<i64: 2, 4, 256>}, {pipeline_mode = #tpu.pipeline_mode<synchronous>, transform_indices = @transform_8, window_bounds = array<i64: 4, 1>}]} {
    %c0 = arith.constant 0 : index
    %c0_0 = arith.constant 0 : index
    %c0_1 = arith.constant 0 : index
    %0 = vector.load %arg1[%c0, %c0_0, %c0_1] : memref<2x4x256xf32, #tpu.memory_space<vmem>>, vector<2x4x256xf32>
    %cst = arith.constant dense<0.000000e+00> : vector<2x4xf32>
    %1 = vector.multi_reduction <add>, %0, %cst [2] : vector<2x4x256xf32> to vector<2x4xf32>
    %2 = vector.shape_cast %1 : vector<2x4xf32> to vector<2x4x1xf32>
    %cst_2 = arith.constant dense<0.000000e+00> : vector<4x1xf32>
    %3 = vector.multi_reduction <add>, %2, %cst_2 [0] : vector<2x4x1xf32> to vector<4x1xf32>
    %cst_3 = arith.constant 0.001953125 : f32
    %4 = vector.broadcast %cst_3 : f32 to vector<4x1xf32>
    %5 = arith.mulf %3, %4 : vector<4x1xf32>
    %cst_4 = arith.constant dense<0.000000e+00> : vector<1xf32>
    %6 = vector.multi_reduction <add>, %5, %cst_4 [0] : vector<4x1xf32> to vector<1xf32>
    %7 = vector.shape_cast %6 : vector<1xf32> to vector<1x1xf32>
    %cst_5 = arith.constant 4.000000e+00 : f32
    %8 = vector.broadcast %cst_5 : f32 to vector<1x1xf32>
    %9 = arith.divf %7, %8 : vector<1x1xf32>
    %10 = vector.broadcast %9 : vector<1x1xf32> to vector<4x1xf32>
    %11 = arith.subf %5, %10 : vector<4x1xf32>
    %12 = vector.broadcast %9 : vector<1x1xf32> to vector<4x1xf32>
    %13 = arith.subf %5, %12 : vector<4x1xf32>
    %14 = arith.mulf %11, %13 : vector<4x1xf32>
    %cst_6 = arith.constant dense<0.000000e+00> : vector<1xf32>
    %15 = vector.multi_reduction <add>, %14, %cst_6 [0] : vector<4x1xf32> to vector<1xf32>
    %16 = vector.shape_cast %15 : vector<1xf32> to vector<1x1xf32>
    %cst_7 = arith.constant 4.000000e+00 : f32
    %17 = vector.broadcast %cst_7 : f32 to vector<1x1xf32>
    %18 = arith.divf %16, %17 : vector<1x1xf32>
    %19 = vector.broadcast %9 : vector<1x1xf32> to vector<4x1xf32>
    %20 = arith.subf %5, %19 : vector<4x1xf32>
    %cst_8 = arith.constant 9.99999974E-6 : f32
    %21 = vector.broadcast %cst_8 : f32 to vector<1x1xf32>
    %22 = arith.addf %18, %21 : vector<1x1xf32>
    %23 = math.sqrt %22 : vector<1x1xf32>
    %24 = vector.broadcast %23 : vector<1x1xf32> to vector<4x1xf32>
    %25 = arith.divf %20, %24 : vector<4x1xf32>
    %c0_9 = arith.constant 0 : index
    %c0_10 = arith.constant 0 : index
    %26 = vector.load %arg2[%c0_9, %c0_10] : memref<16x4xf32, #tpu.memory_space<vmem>>, vector<16x4xf32>
    %cst_11 = arith.constant dense<0.000000e+00> : vector<16x1xf32>
    %27 = tpu.matmul %26, %25, %cst_11 {dimension_numbers = #tpu.dot_dimension_numbers<[1], [0], [0], [1], [0, 0, 1, 1], [], []>} : vector<16x4xf32>, vector<4x1xf32>, vector<16x1xf32> -> vector<16x1xf32>
    %c0_12 = arith.constant 0 : index
    %c0_13 = arith.constant 0 : index
    %28 = vector.load %arg3[%c0_12, %c0_13] : memref<16x1xf32, #tpu.memory_space<vmem>>, vector<16x1xf32>
    %29 = arith.addf %27, %28 : vector<16x1xf32>
    %30 = arith.negf %29 : vector<16x1xf32>
    %31 = math.exp %30 : vector<16x1xf32>
    %cst_14 = arith.constant 1.000000e+00 : f32
    %32 = vector.broadcast %cst_14 : f32 to vector<16x1xf32>
    %33 = arith.addf %32, %31 : vector<16x1xf32>
    %34 = arith.divf %32, %33 : vector<16x1xf32>
    %35 = arith.mulf %29, %34 : vector<16x1xf32>
    %c0_15 = arith.constant 0 : index
    %c0_16 = arith.constant 0 : index
    %36 = vector.load %arg4[%c0_15, %c0_16] : memref<16x16xf32, #tpu.memory_space<vmem>>, vector<16x16xf32>
    %cst_17 = arith.constant dense<0.000000e+00> : vector<16x1xf32>
    %37 = tpu.matmul %36, %35, %cst_17 {dimension_numbers = #tpu.dot_dimension_numbers<[1], [0], [0], [1], [0, 0, 1, 1], [], []>} : vector<16x16xf32>, vector<16x1xf32>, vector<16x1xf32> -> vector<16x1xf32>
    %c0_18 = arith.constant 0 : index
    %c0_19 = arith.constant 0 : index
    %38 = vector.load %arg5[%c0_18, %c0_19] : memref<16x1xf32, #tpu.memory_space<vmem>>, vector<16x1xf32>
    %39 = arith.addf %37, %38 : vector<16x1xf32>
    %40 = arith.negf %39 : vector<16x1xf32>
    %41 = math.exp %40 : vector<16x1xf32>
    %cst_20 = arith.constant 1.000000e+00 : f32
    %42 = vector.broadcast %cst_20 : f32 to vector<16x1xf32>
    %43 = arith.addf %42, %41 : vector<16x1xf32>
    %44 = arith.divf %42, %43 : vector<16x1xf32>
    %45 = arith.mulf %39, %44 : vector<16x1xf32>
    %c0_21 = arith.constant 0 : index
    %c0_22 = arith.constant 0 : index
    %46 = vector.load %arg6[%c0_21, %c0_22] : memref<4x16xf32, #tpu.memory_space<vmem>>, vector<4x16xf32>
    %cst_23 = arith.constant dense<0.000000e+00> : vector<4x1xf32>
    %47 = tpu.matmul %46, %45, %cst_23 {dimension_numbers = #tpu.dot_dimension_numbers<[1], [0], [0], [1], [0, 0, 1, 1], [], []>} : vector<4x16xf32>, vector<16x1xf32>, vector<4x1xf32> -> vector<4x1xf32>
    %c0_24 = arith.constant 0 : index
    %c0_25 = arith.constant 0 : index
    %48 = vector.load %arg7[%c0_24, %c0_25] : memref<4x1xf32, #tpu.memory_space<vmem>>, vector<4x1xf32>
    %49 = arith.addf %47, %48 : vector<4x1xf32>
    %50 = arith.negf %49 : vector<4x1xf32>
    %51 = math.exp %50 : vector<4x1xf32>
    %cst_26 = arith.constant 1.000000e+00 : f32
    %52 = vector.broadcast %cst_26 : f32 to vector<4x1xf32>
    %53 = arith.addf %52, %51 : vector<4x1xf32>
    %54 = arith.divf %52, %53 : vector<4x1xf32>
    %cst_27 = arith.constant 2.000000e+00 : f32
    %55 = vector.broadcast %cst_27 : f32 to vector<4x1xf32>
    %56 = arith.mulf %54, %55 : vector<4x1xf32>
    %c0_28 = arith.constant 0 : index
    %c0_29 = arith.constant 0 : index
    %57 = vector.load %arg9[%c0_28, %c0_29] : memref<4x1xf32, #tpu.memory_space<vmem>>, vector<4x1xf32>
    tpu.vector_store %arg9[%c0_28, %c0_29], %56 {strides = array<i32>} : memref<4x1xf32, #tpu.memory_space<vmem>>, vector<4x1xf32>,
    %c0_30 = arith.constant 0 : index
    %c0_31 = arith.constant 0 : index
    %c0_32 = arith.constant 0 : index
    %58 = vector.load %arg1[%c0_30, %c0_31, %c0_32] : memref<2x4x256xf32, #tpu.memory_space<vmem>>, vector<2x4x256xf32>
    %59 = vector.shape_cast %56 : vector<4x1xf32> to vector<1x4x1xf32>
    %60 = vector.broadcast %59 : vector<1x4x1xf32> to vector<2x4x256xf32>
    %61 = arith.mulf %58, %60 : vector<2x4x256xf32>
    %c0_33 = arith.constant 0 : index
    %c0_34 = arith.constant 0 : index
    %c0_35 = arith.constant 0 : index
    %62 = vector.load %arg8[%c0_33, %c0_34, %c0_35] : memref<2x4x256xf32, #tpu.memory_space<vmem>>, vector<2x4x256xf32>
    tpu.vector_store %arg8[%c0_33, %c0_34, %c0_35], %61 {strides = array<i32>} : memref<2x4x256xf32, #tpu.memory_space<vmem>>, vector<2x4x256xf32>,
    return
  }
  func.func @transform_0(%arg0: i32) -> (i32, i32, i32) {
    %c0_i32 = arith.constant 0 : i32
    %c0_i32_0 = arith.constant 0 : i32
    %c0_i32_1 = arith.constant 0 : i32
    %c0_i32_2 = arith.constant 0 : i32
    return %c0_i32, %c0_i32_0, %c0_i32_1 : i32, i32, i32
  }
  func.func @transform_1(%arg0: i32) -> (i32, i32) {
    %c0_i32 = arith.constant 0 : i32
    %c0_i32_0 = arith.constant 0 : i32
    %c0_i32_1 = arith.constant 0 : i32
    return %c0_i32, %c0_i32_0 : i32, i32
  }
  func.func @transform_2(%arg0: i32) -> (i32, i32) {
    %c0_i32 = arith.constant 0 : i32
    %c0_i32_0 = arith.constant 0 : i32
    %c0_i32_1 = arith.constant 0 : i32
    return %c0_i32, %c0_i32_0 : i32, i32
  }
  func.func @transform_3(%arg0: i32) -> (i32, i32) {
    %c0_i32 = arith.constant 0 : i32
    %c0_i32_0 = arith.constant 0 : i32
    %c0_i32_1 = arith.constant 0 : i32
    return %c0_i32, %c0_i32_0 : i32, i32
  }
  func.func @transform_4(%arg0: i32) -> (i32, i32) {
    %c0_i32 = arith.constant 0 : i32
    %c0_i32_0 = arith.constant 0 : i32
    %c0_i32_1 = arith.constant 0 : i32
    return %c0_i32, %c0_i32_0 : i32, i32
  }
  func.func @transform_5(%arg0: i32) -> (i32, i32) {
    %c0_i32 = arith.constant 0 : i32
    %c0_i32_0 = arith.constant 0 : i32
    %c0_i32_1 = arith.constant 0 : i32
    return %c0_i32, %c0_i32_0 : i32, i32
  }
  func.func @transform_6(%arg0: i32) -> (i32, i32) {
    %c0_i32 = arith.constant 0 : i32
    %c0_i32_0 = arith.constant 0 : i32
    %c0_i32_1 = arith.constant 0 : i32
    return %c0_i32, %c0_i32_0 : i32, i32
  }
  func.func @transform_7(%arg0: i32) -> (i32, i32, i32) {
    %c0_i32 = arith.constant 0 : i32
    %c0_i32_0 = arith.constant 0 : i32
    %c0_i32_1 = arith.constant 0 : i32
    %c0_i32_2 = arith.constant 0 : i32
    return %c0_i32, %c0_i32_0, %c0_i32_1 : i32, i32, i32
  }
  func.func @transform_8(%arg0: i32) -> (i32, i32) {
    %c0_i32 = arith.constant 0 : i32
    %c0_i32_0 = arith.constant 0 : i32
    %c0_i32_1 = arith.constant 0 : i32
    return %c0_i32, %c0_i32_0 : i32, i32
  }
}

</mosaic_0001>

<llo_original>
// kernel: tpu_custom_call.1
$region0: #{tpu_custom_call.1}
  #allocation0 [shape = 'u32[]', space=smem, size = 0x4, offset = 0x4, fixed_abs, tag = 'smem constant byte address 0x4 - core index']
  #allocation1 [shape = 'u32[72,128]{1,0:T(1,128)}', space=vmem, size = 0x9000, scoped, tag = 'internal scratch']
  %s0 = inlined_call_operand.vmem [shape: f32[2,4,256], index: 0, kind: input, shape index: {}]
  %s1 = inlined_call_operand.vmem [shape: f32[16,4], index: 1, kind: input, shape index: {}]
  %s2 = inlined_call_operand.vmem [shape: f32[16,1], index: 2, kind: input, shape index: {}]
  %s3 = inlined_call_operand.vmem [shape: f32[16,16], index: 3, kind: input, shape index: {}]
  %s4 = inlined_call_operand.vmem [shape: f32[16,1], index: 4, kind: input, shape index: {}]
  %s5 = inlined_call_operand.vmem [shape: f32[4,16], index: 5, kind: input, shape index: {}]
  %s6 = inlined_call_operand.vmem [shape: f32[4,1], index: 6, kind: input, shape index: {}]
  %s7 = inlined_call_operand.hbm [shape: f32[2,4,256], index: 7, kind: output, shape index: {0}]
  %s8 = inlined_call_operand.vmem [shape: f32[4,1], index: 8, kind: output, shape index: {1}]
  %9 = xla_tuple %s7, %s8
  %s10 = sld [smem:[#allocation0]]
  $region46: #{tpu_custom_call.1} parent=0
    _
  %s12 = ssub.s32 1, %s10
  %s13 = scalar_select 0, %s12, %s10
  $region1: #{tpu_custom_call.1} parent=0
    #allocation2 [shape = 'u8[8192]{0}', space=vmem, size = 0x2000, scoped, tag = 'output window, operand 0, single buffered']
    #allocation3 [shape = 's32[1]{0}', space=sflag, size = 0x4, scoped, tag = 'scoped memory for tpu_custom_call.1']
    %14 = vsyncpa [#allocation3], 0
    // Predicated region
    $region2: #{tpu_custom_call.1} parent=1 // pred_check
      _
    $region3: #{tpu_custom_call.1} parent=1 // pred_check_branch
      %16 = sbr.rel (0) target = $region5
    $region4: #{tpu_custom_call.1} parent=1 // pred_region
      _
    $region5: #{tpu_custom_call.1} parent=1 // pred_fallthru
      _
    // Predicated region
    $region6: #{tpu_custom_call.1} parent=1 // pred_check
      _
    $region7: #{tpu_custom_call.1} parent=1 // pred_check_branch
      %18 = sbr.rel (0) target = $region9
    $region8: #{tpu_custom_call.1} parent=1 // pred_region
      _
    $region9: #{tpu_custom_call.1} parent=1 // pred_fallthru
      _
    // Predicated region
    $region10: #{tpu_custom_call.1} parent=1 // pred_check
      _
    $region11: #{tpu_custom_call.1} parent=1 // pred_check_branch
      %20 = sbr.rel (0) target = $region13
    $region12: #{tpu_custom_call.1} parent=1 // pred_region
      _
    $region13: #{tpu_custom_call.1} parent=1 // pred_fallthru
      _
    // Predicated region
    $region14: #{tpu_custom_call.1} parent=1 // pred_check
      _
    $region15: #{tpu_custom_call.1} parent=1 // pred_check_branch
      %22 = sbr.rel (0) target = $region17
    $region16: #{tpu_custom_call.1} parent=1 // pred_region
      _
    $region17: #{tpu_custom_call.1} parent=1 // pred_fallthru
      _
    // Predicated region
    $region18: #{tpu_custom_call.1} parent=1 // pred_check
      _
    $region19: #{tpu_custom_call.1} parent=1 // pred_check_branch
      %24 = sbr.rel (0) target = $region21
    $region20: #{tpu_custom_call.1} parent=1 // pred_region
      _
    $region21: #{tpu_custom_call.1} parent=1 // pred_fallthru
      _
    // Predicated region
    $region22: #{tpu_custom_call.1} parent=1 // pred_check
      _
    $region23: #{tpu_custom_call.1} parent=1 // pred_check_branch
      %26 = sbr.rel (0) target = $region25
    $region24: #{tpu_custom_call.1} parent=1 // pred_region
      _
    $region25: #{tpu_custom_call.1} parent=1 // pred_fallthru
      _
    // Predicated region
    $region26: #{tpu_custom_call.1} parent=1 // pred_check
      _
    $region27: #{tpu_custom_call.1} parent=1 // pred_check_branch
      %28 = sbr.rel (0) target = $region29
    $region28: #{tpu_custom_call.1} parent=1 // pred_region
      _
    $region29: #{tpu_custom_call.1} parent=1 // pred_fallthru
      _
    %v29 = vld [vmem:[%s0] sm:$0xff]
    %v30 = vld [vmem:[%s0 + $0x8] sm:$0xff]
    %33 = vst [vmem:[#allocation1] ss:$2 sm:$0xff] %v29
    %v34 = vld.sshfl [vmem:[#allocation1] sm:$0xff pattern:$0x75316420]
    %v35 = vld.sshfl [vmem:[#allocation1 + $0x8] sm:$0xff pattern:$0x75316420]
    %s36 = scalar_lea.vmem [#allocation1], 16
    %37 = vst [vmem:[%s36] ss:$2 sm:$0xff] %v30
    %v38 = vld.sshfl [vmem:[#allocation1 + $0x10] sm:$0xff pattern:$0x75316420]
    %v39 = vld.sshfl [vmem:[#allocation1 + $0x18] sm:$0xff pattern:$0x75316420]
    %vm44 = vcmask 1043456
    %v45 = vsel %vm44, %v34, 0.0
    %v46 = vsel %vm44, %v35, 0.0
    %v47 = vadd.f32 %v45, %v46
    %48 = vadd.xlane.f32.xlu0 %v47
    %v49 = vpop.xlane.xlu0 %48
    %v50 = vsel %vm44, %v38, 0.0
    %v51 = vsel %vm44, %v39, 0.0
    %v52 = vadd.f32 %v50, %v51
    %53 = vadd.xlane.f32.xlu0 %v52
    %v54 = vpop.xlane.xlu0 %53
    %v55 = vsel %vm44, %v49, 0.0
    %v56 = vsel %vm44, %v54, 0.0
    %v57 = vadd.f32 %v55, %v56
    %v58 = vmul.f32 %v57, 0.001953125
    %v59 = vsel %vm44, %v58, 0.0
    %v60 = vrot.slane %v59, 4
    %v61 = vadd.f32 %v59, %v60
    %v62 = vrot.slane %v61, 2
    %v63 = vadd.f32 %v61, %v62
    %v64 = vrot.slane %v63, 1
    %v65 = vadd.f32 %v63, %v64
    %v66 = vrcp.pop 4.0
    %v67 = vmul.f32 4.0, %v66
    %v68 = vsub.f32 1.0, %v67
    %v69 = vmul.f32 %v66, %v68
    %v70 = vadd.f32 %v66, %v69
    %vm71 = vweird.f32 %v66
    %v72 = vsel %vm71, %v66, %v70
    %v73 = vmul.f32 %v65, %v72
    %v74 = vsub.f32 %v58, %v73
    %v75 = vmul.f32 %v74, %v74
    %v76 = vsel %vm44, %v75, 0.0
    %v77 = vrot.slane %v76, 4
    %v78 = vadd.f32 %v76, %v77
    %v79 = vrot.slane %v78, 2
    %v80 = vadd.f32 %v78, %v79
    %v81 = vrot.slane %v80, 1
    %v82 = vadd.f32 %v80, %v81
    %v83 = vmul.f32 %v82, %v72
    %v84 = vadd.f32 %v83, 1e-05
    %v85 = vrsqrt.pop %v84
    %v86 = vmul.f32 %v85, %v84
    %v87 = vmul.f32 %v86, %v85
    %v88 = vmul.f32 0.5, %v87
    %v89 = vsub.f32 1.5, %v88
    %v90 = vmul.f32 %v85, %v89
    %v91 = vmul.f32 %v84, %v90
    %vm92 = vcmp.eq.f32.partialorder %v84, inf
    %v93 = vsel %vm92, %v84, %v91
    %vm94 = vcmp.eq.f32.partialorder %v84, 0.0
    %v95 = vand.u32 %v84, 2147483648
    %v96 = vsel %vm94, %v95, %v93
    %v97 = vrcp.pop %v96
    %v98 = vmul.f32 %v96, %v97
    %v99 = vsub.f32 1.0, %v98
    %v100 = vmul.f32 %v97, %v99
    %v101 = vadd.f32 %v97, %v100
    %vm102 = vweird.f32 %v96
    %vm103 = vweird.f32 %v97
    %vm104 = vmor %vm102, %vm103
    %v105 = vsel %vm104, %v97, %v101
    %v106 = vand.u32 2147483647, %v96
    %vm107 = vcmp.eq.f32.partialorder %v106, 8.507059e+37
    %v108 = vand.u32 %v96, 2147483648
    %v109 = vor.u32 1.1754944e-38, %v108
    %v110 = vsel %vm107, %v109, %v105
    %v111 = vmul.f32 %v74, %v110
    %v112 = vld [vmem:[%s1] sm:$0xff]
    %v113 = vld [vmem:[%s1 + $0x8] sm:$0xff]
    %v114 = vld [vmem:[%s2] sm:$0xff]
    %v115 = vld [vmem:[%s2 + $0x8] sm:$0xff]
    %vm116 = vcmask 31744
    %v118 = vsel %vm116, %v112, 0
    %v121 = vsel %vm116, %v113, 0
    %v124 = vsel %vm44, %v111, 0
    %126 = vmatpush.msra.mxu0 0.0
    %127 = vmatpush.msra.mxu0 0.0
    %128 = vmatpush.msra.mxu0 0.0
    %129 = vmatpush.msra.mxu0 0.0
    %130 = vmatpush.msra.mxu0 0.0
    %131 = vmatpush.msra.mxu0 0.0
    %132 = vmatpush.msra.mxu0 0.0
    %133 = vmatpush.msra.mxu0 0.0
    %134 = vmatpush.msra.mxu0 0.0
    %135 = vmatpush.msra.mxu0 0.0
    %136 = vmatpush.msra.mxu0 0.0
    %137 = vmatpush.msra.mxu0 0.0
    %138 = vmatpush.msra.mxu0 0.0
    %139 = vmatpush.msra.mxu0 0.0
    %140 = vmatpush.msra.mxu0 0.0
    %141 = vmatpush.msra.mxu0 %v124
    %142 = vmatmul.f32.gmra.mxu0 %v118
    %v143 = vpop.f32.mrf.mxu0
    %v144 = vadd.f32 %v114, %v143
    %145 = vmatmul.f32.gmra.mxu0 %v121
    %v146 = vpop.f32.mrf.mxu0
    %v147 = vadd.f32 %v115, %v146
    %148 = vdwg.mxu0
    %v149 = vxor.u32 %v144, 2147483648
    %v150 = vxor.u32 %v147, 2147483648
    %v151 = vmul.f32 %v149, 1.442695
    %v152 = vpow.pop %v151
    %v153 = vmul.f32 %v150, 1.442695
    %v154 = vpow.pop %v153
    %v155 = vadd.f32 %v152, 1.0
    %v156 = vadd.f32 %v154, 1.0
    %v157 = vrcp.pop %v155
    %v158 = vmul.f32 %v155, %v157
    %v159 = vsub.f32 1.0, %v158
    %v160 = vmul.f32 %v157, %v159
    %v161 = vadd.f32 %v157, %v160
    %vm162 = vweird.f32 %v155
    %vm163 = vweird.f32 %v157
    %vm164 = vmor %vm162, %vm163
    %v165 = vsel %vm164, %v157, %v161
    %v166 = vand.u32 2147483647, %v155
    %vm167 = vcmp.eq.f32.partialorder %v166, 8.507059e+37
    %v168 = vand.u32 %v155, 2147483648
    %v169 = vor.u32 1.1754944e-38, %v168
    %v170 = vsel %vm167, %v169, %v165
    %v171 = vmul.f32 1.0, %v170
    %v172 = vrcp.pop %v156
    %v173 = vmul.f32 %v156, %v172
    %v174 = vsub.f32 1.0, %v173
    %v175 = vmul.f32 %v172, %v174
    %v176 = vadd.f32 %v172, %v175
    %vm177 = vweird.f32 %v156
    %vm178 = vweird.f32 %v172
    %vm179 = vmor %vm177, %vm178
    %v180 = vsel %vm179, %v172, %v176
    %v181 = vand.u32 2147483647, %v156
    %vm182 = vcmp.eq.f32.partialorder %v181, 8.507059e+37
    %v183 = vand.u32 %v156, 2147483648
    %v184 = vor.u32 1.1754944e-38, %v183
    %v185 = vsel %vm182, %v184, %v180
    %v186 = vmul.f32 1.0, %v185
    %v187 = vmul.f32 %v144, %v171
    %v188 = vmul.f32 %v147, %v186
    %v189 = vld [vmem:[%s3] sm:$0xff]
    %v190 = vld [vmem:[%s3 + $0x8] sm:$0xff]
    %v191 = vld [vmem:[%s4] sm:$0xff]
    %v192 = vld [vmem:[%s4 + $0x8] sm:$0xff]
    %vm193 = vcmask 130048
    %v195 = vsel %vm193, %v189, 0
    %v198 = vsel %vm193, %v190, 0
    %200 = vmatpush.msra.mxu0 0.0
    %201 = vmatpush.msra.mxu0 0.0
    %202 = vmatpush.msra.mxu0 0.0
    %203 = vmatpush.msra.mxu0 0.0
    %204 = vmatpush.msra.mxu0 0.0
    %205 = vmatpush.msra.mxu0 0.0
    %206 = vmatpush.msra.mxu0 0.0
    %207 = vmatpush.msra.mxu0 0.0
    %208 = vmatpush.msra.mxu0 0.0
    %209 = vmatpush.msra.mxu0 0.0
    %210 = vmatpush.msra.mxu0 0.0
    %211 = vmatpush.msra.mxu0 0.0
    %212 = vmatpush.msra.mxu0 0.0
    %213 = vmatpush.msra.mxu0 0.0
    %214 = vmatpush.msra.mxu0 %v188
    %215 = vmatpush.msra.mxu0 %v187
    %216 = vmatmul.f32.gmra.mxu0 %v195
    %v217 = vpop.f32.mrf.mxu0
    %v218 = vadd.f32 %v191, %v217
    %219 = vmatmul.f32.gmra.mxu0 %v198
    %v220 = vpop.f32.mrf.mxu0
    %v221 = vadd.f32 %v192, %v220
    %222 = vdwg.mxu0
    %v223 = vxor.u32 %v218, 2147483648
    %v224 = vxor.u32 %v221, 2147483648
    %v225 = vmul.f32 %v223, 1.442695
    %v226 = vpow.pop %v225
    %v227 = vmul.f32 %v224, 1.442695
    %v228 = vpow.pop %v227
    %v229 = vadd.f32 %v226, 1.0
    %v230 = vadd.f32 %v228, 1.0
    %v231 = vrcp.pop %v229
    %v232 = vmul.f32 %v229, %v231
    %v233 = vsub.f32 1.0, %v232
    %v234 = vmul.f32 %v231, %v233
    %v235 = vadd.f32 %v231, %v234
    %vm236 = vweird.f32 %v229
    %vm237 = vweird.f32 %v231
    %vm238 = vmor %vm236, %vm237
    %v239 = vsel %vm238, %v231, %v235
    %v240 = vand.u32 2147483647, %v229
    %vm241 = vcmp.eq.f32.partialorder %v240, 8.507059e+37
    %v242 = vand.u32 %v229, 2147483648
    %v243 = vor.u32 1.1754944e-38, %v242
    %v244 = vsel %vm241, %v243, %v239
    %v245 = vmul.f32 1.0, %v244
    %v246 = vrcp.pop %v230
    %v247 = vmul.f32 %v230, %v246
    %v248 = vsub.f32 1.0, %v247
    %v249 = vmul.f32 %v246, %v248
    %v250 = vadd.f32 %v246, %v249
    %vm251 = vweird.f32 %v230
    %vm252 = vweird.f32 %v246
    %vm253 = vmor %vm251, %vm252
    %v254 = vsel %vm253, %v246, %v250
    %v255 = vand.u32 2147483647, %v230
    %vm256 = vcmp.eq.f32.partialorder %v255, 8.507059e+37
    %v257 = vand.u32 %v230, 2147483648
    %v258 = vor.u32 1.1754944e-38, %v257
    %v259 = vsel %vm256, %v258, %v254
    %v260 = vmul.f32 1.0, %v259
    %v261 = vmul.f32 %v218, %v245
    %v262 = vmul.f32 %v221, %v260
    %v263 = vld [vmem:[%s5] sm:$0xf]
    %v264 = vld [vmem:[%s6] sm:$0xf]
    %v266 = vsel %vm193, %v263, 0
    %268 = vmatpush.msra.mxu0 0.0
    %269 = vmatpush.msra.mxu0 0.0
    %270 = vmatpush.msra.mxu0 0.0
    %271 = vmatpush.msra.mxu0 0.0
    %272 = vmatpush.msra.mxu0 0.0
    %273 = vmatpush.msra.mxu0 0.0
    %274 = vmatpush.msra.mxu0 0.0
    %275 = vmatpush.msra.mxu0 0.0
    %276 = vmatpush.msra.mxu0 0.0
    %277 = vmatpush.msra.mxu0 0.0
    %278 = vmatpush.msra.mxu0 0.0
    %279 = vmatpush.msra.mxu0 0.0
    %280 = vmatpush.msra.mxu0 0.0
    %281 = vmatpush.msra.mxu0 0.0
    %282 = vmatpush.msra.mxu0 %v262
    %283 = vmatpush.msra.mxu0 %v261
    %284 = vmatmul.f32.gmra.mxu0 %v266
    %v285 = vpop.f32.mrf.mxu0
    %v286 = vadd.f32 %v264, %v285
    %287 = vdwg.mxu0
    %v288 = vxor.u32 %v286, 2147483648
    %v289 = vmul.f32 %v288, 1.442695
    %v290 = vpow.pop %v289
    %v291 = vadd.f32 %v290, 1.0
    %v292 = vrcp.pop %v291
    %v293 = vmul.f32 %v291, %v292
    %v294 = vsub.f32 1.0, %v293
    %v295 = vmul.f32 %v292, %v294
    %v296 = vadd.f32 %v292, %v295
    %vm297 = vweird.f32 %v291
    %vm298 = vweird.f32 %v292
    %vm299 = vmor %vm297, %vm298
    %v300 = vsel %vm299, %v292, %v296
    %v301 = vand.u32 2147483647, %v291
    %vm302 = vcmp.eq.f32.partialorder %v301, 8.507059e+37
    %v303 = vand.u32 %v291, 2147483648
    %v304 = vor.u32 1.1754944e-38, %v303
    %v305 = vsel %vm302, %v304, %v300
    %v306 = vmul.f32 1.0, %v305
    %v307 = vmul.f32 %v306, 2.0
    %vm308 = vcmask 3072
    %309 = vst.msk [vmem:[%s8] sm:$0xf] %vm308, %v307
    %v310 = vld [vmem:[%s0] sm:$0xff]
    %v311 = vld [vmem:[%s0 + $0x8] sm:$0xff]
    %313 = vset.pattern.permute.xlu0 0
    %314 = vperm.xlu0 %313, %v307
    %v315 = vpop.permute.xlu0 %314
    %v317 = vunpack.c.l.s4 839922192
    %v318 = vunpack.c.0.s8 %v317
    %v319 = vperm.slane %v315, %v318
    %v321 = vmul.f32 %v310, %v319
    %v322 = vmul.f32 %v311, %v319
    %323 = vst [vmem:[#allocation2] sm:$0xff] %v321
    %324 = vst [vmem:[#allocation2 + $0x8] sm:$0xff] %v322
    // Predicated region
    $region30: #{tpu_custom_call.1} parent=1 // pred_check
      _
    $region31: #{tpu_custom_call.1} parent=1 // pred_check_branch
      %326 = sbr.rel (0) target = $region33
    $region32: #{tpu_custom_call.1} parent=1 // pred_region
      %328 = vsyncadd [#allocation3], 0
      %s329 = sshll.u32 [#allocation2], 4
      %s330 = int_to_ptr.vmem [resolvable:$true] %s329
      %s331 = sshll.u32 %s7, 4
      %s332 = int_to_ptr.hbm [resolvable:$true] %s331
      %337 = dma.vmem_to_hbm [thread:$0]  %s330, 256, %s332, [#allocation3], 128, 128, 8
    $region33: #{tpu_custom_call.1} parent=1 // pred_fallthru
      _
    // Predicated region
    $region34: #{tpu_custom_call.1} parent=1 // pred_check
      _
    $region35: #{tpu_custom_call.1} parent=1 // pred_check_branch
      %339 = sbr.rel (0) target = $region37
    $region36: #{tpu_custom_call.1} parent=1 // pred_region
      _
    $region37: #{tpu_custom_call.1} parent=1 // pred_fallthru
      _
    // Predicated region
    $region38: #{tpu_custom_call.1} parent=1 // pred_check
      _
    $region39: #{tpu_custom_call.1} parent=1 // pred_check_branch
      %341 = sbr.rel (0) target = $region41
    $region40: #{tpu_custom_call.1} parent=1 // pred_region
      %343 = dma.done [#allocation3], 256
    $region41: #{tpu_custom_call.1} parent=1 // pred_fallthru
      _
    // Predicated region
    $region42: #{tpu_custom_call.1} parent=1 // pred_check
      _
    $region43: #{tpu_custom_call.1} parent=1 // pred_check_branch
      %345 = sbr.rel (0) target = $region45
    $region44: #{tpu_custom_call.1} parent=1 // pred_region
      _
    $region45: #{tpu_custom_call.1} parent=1 // pred_fallthru
      _
    %346 = vsyncpa [#allocation3], 1

</llo_original>
